<compile_context>
chip_gen: v7x
topology: tpu7x:2x2x1
jax: 0.10.0
libtpu: 0.0.40
codegen_flags: <defaults>
</compile_context>

<pallas_src>
import functools

import jax
import jax.numpy as jnp
import numpy as np
from jax import lax
from jax.experimental import pallas as pl
from jax.experimental.pallas import tpu as pltpu


_LANE = 128
_SUBLANE = 8


def _round_up(x, m):
    return ((x + m - 1) // m) * m


def _vmem_capacity_bytes():
    try:
        return int(pltpu.get_tpu_info().vmem_capacity_bytes)
    except Exception:
        return 64 * 1024 * 1024  # conservative (v7x per-TensorCore physical VMEM)


def _mlp_classifier_kernel(tok_ref, table_ref, w2_ref, b2_ref, out_ref, cnt_ref, *,
                           n_seq, n_classes):
    """Grid = (batch tiles [parallel], sequence tiles [arbitrary/reduction]).

    tok_ref   : (TB, TS) int32 token ids (padded positions hold -1 -> count nothing)
    table_ref : (Vp, Hp) resident table3 = tanh(tanh(emb) @ W1 + b1)
    w2_ref    : (Hp, Op) resident output weights, b2_ref: (1, Op) resident bias
    cnt_ref   : (TB, Vp) f32 running per-row token histogram over the sequence axis
    out_ref   : (TB, Op) log-probabilities (written once, on the last seq tile)
    """
    s = pl.program_id(1)
    TB, TS = tok_ref.shape
    Vp = table_ref.shape[0]

    @pl.when(s == 0)
    def _init():
        cnt_ref[...] = jnp.zeros_like(cnt_ref)

    # Per-batch-row token histogram for this sequence tile (VPU work only; the streamed
    # bytes are just the int32 tokens).  Pad tokens are -1 and match no vocab lane.
    tok = tok_ref[...]                                                     # (TB, TS)
    vocab = lax.broadcasted_iota(jnp.int32, (TB, TS, Vp), 2)
    onehot = (tok[:, :, None] == vocab).astype(jnp.float32)               # (TB, TS, Vp)
    cnt_ref[...] += jnp.sum(onehot, axis=1)                               # (TB, Vp)

    @pl.when(s == pl.num_programs(1) - 1)
    def _finalize():
        # pooled = mean over the true sequence length of table3[token]  (counts are exact
        # small integers in f32, so this equals the gathered-row mean bit-for-bit up to
        # f32 summation order).
        pooled = jnp.dot(cnt_ref[...] * (1.0 / n_seq),
                         table_ref[...].astype(jnp.float32),
                         preferred_element_type=jnp.float32)              # (TB, Hp)
        logits = jnp.dot(pooled, w2_ref[...],
                         preferred_element_type=jnp.float32) + b2_ref[...]  # (TB, Op)
        # Mask padded class lanes so they do not perturb the log-softmax.
        lane = lax.broadcasted_iota(jnp.int32, logits.shape, 1)
        logits = jnp.where(lane < n_classes, logits, -jnp.inf)
        m = jnp.max(logits, axis=1, keepdims=True)
        z = logits - m
        lse = jnp.log(jnp.sum(jnp.exp(z), axis=1, keepdims=True))
        out_ref[...] = (z - lse).astype(out_ref.dtype)


def mlp_classifier_forward(tokens, emb_table, w1, b1, w2, b2, *,
                           table_dtype=jnp.float32, block_b=128, block_s=None):
    """tokens: (B, S) int32 (batch_first=True).  Linear weights stored pre-transposed
    as (in, out).  Returns log-probabilities of shape (B, output_dim)."""
    B, S = tokens.shape
    V, _E = emb_table.shape
    H = w1.shape[1]
    O = w2.shape[1]

    # --- Algebraic fusion (valid because dropout p=0.0 and the per-token row gather
    # commutes with the row-wise tanh / Linear / tanh chain):
    #   h2[s, b, :] = tanh(tanh(emb[token]) @ W1 + b1) = table3[token]
    table3 = jnp.tanh(jnp.tanh(emb_table.astype(jnp.float32)) @ w1 + b1)   # (V, H)

    # --- Lane-dense / sublane-aligned padding, all done in the wrapper (tiny arrays).
    Hp = _round_up(H, _LANE)
    Op = _round_up(O, _LANE)
    Vp = _round_up(V, _LANE)

    TB = min(_round_up(block_b, _SUBLANE), _round_up(B, _SUBLANE))
    Bp = _round_up(B, TB)
    # v7x megacore: make sure the "parallel" batch axis has >= 2 blocks whenever the
    # batch is large enough, so both TensorCores get work.
    if Bp // TB < 2 and Bp >= 2 * _SUBLANE:
        TB = _round_up(Bp // 2, _SUBLANE)
        Bp = _round_up(B, TB)

    # Keep the per-tile one-hot intermediate (TB, TS, Vp) f32 bounded (~4 MiB) so large
    # sequence tiles never blow up vreg/VMEM pressure; tokens themselves are tiny.
    onehot_budget = 4 * 1024 * 1024
    ts_cap = max(_LANE, ((onehot_budget // (TB * Vp * 4)) // _LANE) * _LANE)
    if block_s is None:
        block_s = min(S, 2048)
    TS = min(_round_up(min(block_s, S), _LANE), ts_cap)
    Sp = _round_up(S, TS)

    # Padded operands.  Pad tokens with -1 so padded positions contribute no counts;
    # padded table / weight rows & columns are zero.
    tok_p = jnp.full((Bp, Sp), -1, jnp.int32).at[:B, :S].set(tokens.astype(jnp.int32))
    table_p = jnp.zeros((Vp, Hp), jnp.float32).at[:V, :H].set(table3).astype(table_dtype)
    w2p = jnp.zeros((Hp, Op), jnp.float32).at[:H, :O].set(w2)
    b2p = jnp.zeros((1, Op), jnp.float32).at[0, :O].set(b2)

    # TODO(synk): for very large vocabularies (Vp*Hp no longer VMEM-resident) switch to an
    # in-kernel row-gather path (scalar-prefetch tokens + pl.Element BlockSpec) instead of
    # the counts @ table matmul.

    grid = (Bp // TB, Sp // TS)

    table_item = jnp.dtype(table_dtype).itemsize
    vmem_needed = (2 * TB * TS * 4                 # tokens, double-buffered
                   + 2 * Vp * Hp * table_item      # resident table (2 buffers)
                   + 2 * (Hp * Op + Op) * 4        # resident W2 / b2
                   + 2 * TB * Op * 4               # output tile
                   + TB * Vp * 4                   # counts accumulator scratch
                   + 2 * TB * TS * Vp * 4)         # one-hot intermediate headroom
    vmem_cap = _vmem_capacity_bytes()
    vmem_limit = int(min(vmem_cap - 8 * 1024 * 1024,
                         max(vmem_needed + 8 * 1024 * 1024, 16 * 1024 * 1024)))

    cost = pl.CostEstimate(
        flops=int(2 * Bp * Sp * Vp + 2 * Bp * (Vp * Hp + Hp * Op)),
        transcendentals=int(Bp * Op),
        bytes_accessed=int(Bp * Sp * 4 + Vp * Hp * table_item
                           + (Hp * Op + Op) * 4 + Bp * Op * 4),
    )

    out = pl.pallas_call(
        functools.partial(_mlp_classifier_kernel, n_seq=S, n_classes=O),
        out_shape=jax.ShapeDtypeStruct((Bp, Op), jnp.float32),
        grid_spec=pltpu.PrefetchScalarGridSpec(
            num_scalar_prefetch=0,
            grid=grid,
            in_specs=[
                pl.BlockSpec((TB, TS), lambda b, s: (b, s)),   # streamed tokens (only stream)
                pl.BlockSpec((Vp, Hp), lambda b, s: (0, 0)),   # resident table3
                pl.BlockSpec((Hp, Op), lambda b, s: (0, 0)),   # resident W2
                pl.BlockSpec((1, Op), lambda b, s: (0, 0)),    # resident b2
            ],
            out_specs=pl.BlockSpec((TB, Op), lambda b, s: (b, 0)),  # lane-dense output
            scratch_shapes=[pltpu.VMEM((TB, Vp), jnp.float32)],     # counts accumulator
        ),
        compiler_params=pltpu.CompilerParams(
            dimension_semantics=("parallel", "arbitrary"),
            vmem_limit_bytes=vmem_limit,
        ),
        cost_estimate=cost,
    )(tok_p, table_p, w2p, b2p)

    return out[:B, :O]


def reference_forward(tokens, emb_table, w1, b1, w2, b2):
    """Plain-JAX replica of the PyTorch forward (f32)."""
    seq = tokens.T                                              # (S, B)
    emb = jnp.take(emb_table, seq, axis=0).astype(jnp.float32)  # (S, B, E)
    h = jnp.tanh(jnp.tanh(emb) @ w1 + b1)                       # (S, B, H)
    pooled = h.mean(axis=0)                                     # (B, H)
    logits = pooled @ w2 + b2                                   # (B, O)
    return jax.nn.log_softmax(logits, axis=1)


if __name__ == "__main__":
    # Module hyper-params (small, consistent with the module's __init__)
    input_dim = 16      # vocab size
    embedding_dim = 8
    hidden_dim = 32
    output_dim = 4
    batch = 2
    seq_len = 8

    key = jax.random.PRNGKey(0)
    k_emb, k_w1, k_b1, k_w2, k_b2, k_tok = jax.random.split(key, 6)

    # Deterministic PyTorch-like init; Linear weights stored pre-transposed as (in, out).
    emb_table = jax.random.normal(k_emb, (input_dim, embedding_dim), jnp.float32)
    bound1 = 1.0 / np.sqrt(embedding_dim)
    w1 = jax.random.uniform(k_w1, (embedding_dim, hidden_dim), jnp.float32, -bound1, bound1)
    b1 = jax.random.uniform(k_b1, (hidden_dim,), jnp.float32, -bound1, bound1)
    bound2 = 1.0 / np.sqrt(hidden_dim)
    w2 = jax.random.uniform(k_w2, (hidden_dim, output_dim), jnp.float32, -bound2, bound2)
    b2 = jax.random.uniform(k_b2, (output_dim,), jnp.float32, -bound2, bound2)

    tokens = jax.random.randint(k_tok, (batch, seq_len), 0, input_dim, jnp.int32)

    ref = np.asarray(jax.block_until_ready(
        reference_forward(tokens, emb_table, w1, b1, w2, b2)))

    # f32 table: tight check against the PyTorch-semantics reference.
    out_f32 = np.asarray(jax.block_until_ready(
        mlp_classifier_forward(tokens, emb_table, w1, b1, w2, b2,
                               table_dtype=jnp.float32)))
    np.testing.assert_allclose(out_f32, ref, rtol=1e-5, atol=1e-5)
    np.testing.assert_allclose(np.exp(out_f32).sum(axis=1), np.ones(batch), rtol=1e-5)

    # bf16 resident table (halves the one-time table bytes / VMEM footprint): loose check.
    out_bf16 = np.asarray(jax.block_until_ready(
        mlp_classifier_forward(tokens, emb_table, w1, b1, w2, b2,
                               table_dtype=jnp.bfloat16)))
    np.testing.assert_allclose(out_bf16, ref, rtol=5e-2, atol=5e-2)

    print("KERNEL_OK")
</pallas_src>

<mosaic_0001>
module attributes {stable_mosaic.version = 11 : i64} {
  func.func @_mlp_classifier_kernel(%arg0: i32, %arg1: i32, %arg2: memref<8x128xi32, #tpu.memory_space<vmem>>, %arg3: memref<128x128xf32, #tpu.memory_space<vmem>>, %arg4: memref<128x128xf32, #tpu.memory_space<vmem>>, %arg5: memref<1x128xf32, #tpu.memory_space<vmem>>, %arg6: memref<8x128xf32, #tpu.memory_space<vmem>>, %arg7: memref<8x128xf32, #tpu.memory_space<vmem>>) attributes {dimension_semantics = [#tpu.dimension_semantics<parallel>, #tpu.dimension_semantics<arbitrary>], iteration_bounds = array<i64: 1, 1>, scalar_prefetch = 0 : i64, scratch_operands = 1 : i64, tpu.core_type = #tpu.core_type<tc>, window_params = [{transform_indices = @transform_0, window_bounds = array<i64: 8, 128>}, {pipeline_mode = #tpu.pipeline_mode<synchronous>, transform_indices = @transform_1, window_bounds = array<i64: 128, 128>}, {pipeline_mode = #tpu.pipeline_mode<synchronous>, transform_indices = @transform_2, window_bounds = array<i64: 128, 128>}, {pipeline_mode = #tpu.pipeline_mode<synchronous>, transform_indices = @transform_3, window_bounds = array<i64: 1, 128>}, {transform_indices = @transform_4, window_bounds = array<i64: 8, 128>}]} {
    %c0_i32 = arith.constant 0 : i32
    %0 = arith.cmpi eq, %arg1, %c0_i32 : i32
    %1 = arith.extui %0 : i1 to i32
    %c0_i32_0 = arith.constant 0 : i32
    %2 = arith.cmpi ne, %1, %c0_i32_0 : i32
    scf.if %2 {
      %cst_8 = arith.constant 0.000000e+00 : f32
      %17 = vector.broadcast %cst_8 : f32 to vector<8x128xf32>
      %c0_9 = arith.constant 0 : index
      %c0_10 = arith.constant 0 : index
      %18 = vector.load %arg7[%c0_9, %c0_10] : memref<8x128xf32, #tpu.memory_space<vmem>>, vector<8x128xf32>
      tpu.vector_store %arg7[%c0_9, %c0_10], %17 {strides = array<i32>} : memref<8x128xf32, #tpu.memory_space<vmem>>, vector<8x128xf32>,
    } else {
    }
    %c0 = arith.constant 0 : index
    %c0_1 = arith.constant 0 : index
    %3 = vector.load %arg2[%c0, %c0_1] : memref<8x128xi32, #tpu.memory_space<vmem>>, vector<8x128xi32>
    %4 = tpu.iota {dimensions = array<i32: 2>} : vector<8x128x128xi32>
    %5 = vector.shape_cast %3 : vector<8x128xi32> to vector<8x128x1xi32>
    %6 = vector.broadcast %5 : vector<8x128x1xi32> to vector<8x128x128xi32>
    %7 = arith.cmpi eq, %6, %4 : vector<8x128x128xi32>
    %8 = arith.extui %7 : vector<8x128x128xi1> to vector<8x128x128xi32>
    %9 = arith.sitofp %8 : vector<8x128x128xi32> to vector<8x128x128xf32>
    %c0_2 = arith.constant 0 : index
    %c0_3 = arith.constant 0 : index
    %10 = vector.load %arg7[%c0_2, %c0_3] : memref<8x128xf32, #tpu.memory_space<vmem>>, vector<8x128xf32>
    %cst = arith.constant dense<0.000000e+00> : vector<8x128xf32>
    %11 = vector.multi_reduction <add>, %9, %cst [1] : vector<8x128x128xf32> to vector<8x128xf32>
    %12 = arith.addf %10, %11 : vector<8x128xf32>
    %c0_4 = arith.constant 0 : index
    %c0_5 = arith.constant 0 : index
    %13 = vector.load %arg7[%c0_4, %c0_5] : memref<8x128xf32, #tpu.memory_space<vmem>>, vector<8x128xf32>
    tpu.vector_store %arg7[%c0_4, %c0_5], %12 {strides = array<i32>} : memref<8x128xf32, #tpu.memory_space<vmem>>, vector<8x128xf32>,
    %c0_i32_6 = arith.constant 0 : i32
    %14 = arith.cmpi eq, %arg1, %c0_i32_6 : i32
    %15 = arith.extui %14 : i1 to i32
    %c0_i32_7 = arith.constant 0 : i32
    %16 = arith.cmpi ne, %15, %c0_i32_7 : i32
    scf.if %16 {
      %c0_8 = arith.constant 0 : index
      %c0_9 = arith.constant 0 : index
      %17 = vector.load %arg7[%c0_8, %c0_9] : memref<8x128xf32, #tpu.memory_space<vmem>>, vector<8x128xf32>
      %cst_10 = arith.constant 1.250000e-01 : f32
      %18 = vector.broadcast %cst_10 : f32 to vector<8x128xf32>
      %19 = arith.mulf %17, %18 : vector<8x128xf32>
      %c0_11 = arith.constant 0 : index
      %c0_12 = arith.constant 0 : index
      %20 = vector.load %arg3[%c0_11, %c0_12] : memref<128x128xf32, #tpu.memory_space<vmem>>, vector<128x128xf32>
      %cst_13 = arith.constant dense<0.000000e+00> : vector<8x128xf32>
      %21 = tpu.matmul %19, %20, %cst_13 {dimension_numbers = #tpu.dot_dimension_numbers<[1], [0], [0], [1], [0, 0, 1, 1], [], []>} : vector<8x128xf32>, vector<128x128xf32>, vector<8x128xf32> -> vector<8x128xf32>
      %c0_14 = arith.constant 0 : index
      %c0_15 = arith.constant 0 : index
      %22 = vector.load %arg4[%c0_14, %c0_15] : memref<128x128xf32, #tpu.memory_space<vmem>>, vector<128x128xf32>
      %cst_16 = arith.constant dense<0.000000e+00> : vector<8x128xf32>
      %23 = tpu.matmul %21, %22, %cst_16 {dimension_numbers = #tpu.dot_dimension_numbers<[1], [0], [0], [1], [0, 0, 1, 1], [], []>} : vector<8x128xf32>, vector<128x128xf32>, vector<8x128xf32> -> vector<8x128xf32>
      %c0_17 = arith.constant 0 : index
      %c0_18 = arith.constant 0 : index
      %24 = vector.load %arg5[%c0_17, %c0_18] : memref<1x128xf32, #tpu.memory_space<vmem>>, vector<1x128xf32>
      %25 = vector.broadcast %24 : vector<1x128xf32> to vector<8x128xf32>
      %26 = arith.addf %23, %25 : vector<8x128xf32>
      %27 = tpu.iota {dimensions = array<i32: 1>} : vector<8x128xi32>
      %c4_i32 = arith.constant 4 : i32
      %28 = vector.broadcast %c4_i32 : i32 to vector<8x128xi32>
      %29 = arith.cmpi slt, %27, %28 : vector<8x128xi32>
      %cst_19 = arith.constant 0xFF800000 : f32
      %30 = vector.broadcast %cst_19 : f32 to vector<8x128xf32>
      %31 = arith.select %29, %26, %30 : vector<8x128xi1>, vector<8x128xf32>
      %cst_20 = arith.constant dense<0xFF800000> : vector<8xf32>
      %32 = vector.multi_reduction <maximumf>, %31, %cst_20 [1] : vector<8x128xf32> to vector<8xf32>
      %33 = vector.shape_cast %32 : vector<8xf32> to vector<8x1xf32>
      %34 = vector.broadcast %33 : vector<8x1xf32> to vector<8x128xf32>
      %35 = arith.subf %31, %34 : vector<8x128xf32>
      %36 = math.exp %35 : vector<8x128xf32>
      %cst_21 = arith.constant dense<0.000000e+00> : vector<8xf32>
      %37 = vector.multi_reduction <add>, %36, %cst_21 [1] : vector<8x128xf32> to vector<8xf32>
      %38 = vector.shape_cast %37 : vector<8xf32> to vector<8x1xf32>
      %39 = math.log %38 : vector<8x1xf32>
      %40 = vector.broadcast %39 : vector<8x1xf32> to vector<8x128xf32>
      %41 = arith.subf %35, %40 : vector<8x128xf32>
      %c0_22 = arith.constant 0 : index
      %c0_23 = arith.constant 0 : index
      %42 = vector.load %arg6[%c0_22, %c0_23] : memref<8x128xf32, #tpu.memory_space<vmem>>, vector<8x128xf32>
      tpu.vector_store %arg6[%c0_22, %c0_23], %41 {strides = array<i32>} : memref<8x128xf32, #tpu.memory_space<vmem>>, vector<8x128xf32>,
    } else {
    }
    return
  }
  func.func @transform_0(%arg0: i32, %arg1: i32) -> (i32, i32) {
    %c0_i32 = arith.constant 0 : i32
    return %arg0, %arg1 : i32, i32
  }
  func.func @transform_1(%arg0: i32, %arg1: i32) -> (i32, i32) {
    %c0_i32 = arith.constant 0 : i32
    %c0_i32_0 = arith.constant 0 : i32
    %c0_i32_1 = arith.constant 0 : i32
    return %c0_i32, %c0_i32_0 : i32, i32
  }
  func.func @transform_2(%arg0: i32, %arg1: i32) -> (i32, i32) {
    %c0_i32 = arith.constant 0 : i32
    %c0_i32_0 = arith.constant 0 : i32
    %c0_i32_1 = arith.constant 0 : i32
    return %c0_i32, %c0_i32_0 : i32, i32
  }
  func.func @transform_3(%arg0: i32, %arg1: i32) -> (i32, i32) {
    %c0_i32 = arith.constant 0 : i32
    %c0_i32_0 = arith.constant 0 : i32
    %c0_i32_1 = arith.constant 0 : i32
    return %c0_i32, %c0_i32_0 : i32, i32
  }
  func.func @transform_4(%arg0: i32, %arg1: i32) -> (i32, i32) {
    %c0_i32 = arith.constant 0 : i32
    %c0_i32_0 = arith.constant 0 : i32
    return %arg0, %c0_i32 : i32, i32
  }
}

</mosaic_0001>

<llo_original>
// kernel: tpu_custom_call.1
$region0: #{tpu_custom_call.1}
  #allocation0 [shape = 'u32[]', space=smem, size = 0x4, offset = 0x4, fixed_abs, tag = 'smem constant byte address 0x4 - core index']
  #allocation1 [shape = 'u32[144,128]{1,0:T(1,128)}', space=vmem, size = 0x12000, scoped, tag = 'internal scratch']
  #allocation2 [shape = 'f32[8,128]{1,0:T(8,128)}', space=vmem, size = 0x1000, scoped, tag = 'scratch operand']
  %s0 = inlined_call_operand.hbm [shape: s32[8,128], index: 0, kind: input, shape index: {}]
  %s1 = inlined_call_operand.hbm [shape: f32[128,128], index: 1, kind: input, shape index: {}]
  %s2 = inlined_call_operand.hbm [shape: f32[128,128], index: 2, kind: input, shape index: {}]
  %s3 = inlined_call_operand.vmem [shape: f32[1,128], index: 3, kind: input, shape index: {}]
  %s4 = inlined_call_operand.hbm [shape: f32[8,128], index: 4, kind: output, shape index: {}]
  %s5 = sld [smem:[#allocation0]]
  $region46: #{tpu_custom_call.1} parent=0
    _
  %s7 = ssub.s32 1, %s5
  %s8 = scalar_select 0, %s7, %s5
  $region1: #{tpu_custom_call.1} parent=0
    #allocation3 [shape = 'u8[4096]{0}', space=vmem, size = 0x1000, scoped, tag = 'input window, operand 0, single buffered']
    #allocation4 [shape = 's32[1]{0}', space=sflag, size = 0x4, scoped, tag = 'scoped memory for tpu_custom_call.1']
    #allocation5 [shape = 's32[1]{0}', space=sflag, size = 0x4, scoped, tag = 'scoped memory for tpu_custom_call.1']
    #allocation6 [shape = 'u8[65536]{0}', space=vmem, size = 0x10000, scoped, tag = 'input window, operand 1, single buffered']
    #allocation7 [shape = 's32[1]{0}', space=sflag, size = 0x4, scoped, tag = 'scoped memory for tpu_custom_call.1']
    #allocation8 [shape = 'u8[65536]{0}', space=vmem, size = 0x10000, scoped, tag = 'input window, operand 2, single buffered']
    #allocation9 [shape = 'u8[4096]{0}', space=vmem, size = 0x1000, scoped, tag = 'output window, operand 0, single buffered']
    %9 = vsyncpa [#allocation4], 0
    %10 = vsyncpa [#allocation7], 0
    %11 = vsyncpa [#allocation5], 0
    // Predicated region
    $region2: #{tpu_custom_call.1} parent=1 // pred_check
      _
    $region3: #{tpu_custom_call.1} parent=1 // pred_check_branch
      %13 = sbr.rel (0) target = $region5
    $region4: #{tpu_custom_call.1} parent=1 // pred_region
      %s15 = ssub.s32 128, 128
      %16 = vsyncadd [#allocation4], %s15
      %s18 = sshll.u32 [#allocation3], 4
      %s19 = int_to_ptr.vmem [resolvable:$true] %s18
      %21 = dma.hbm_to_vmem [thread:$0]  %s0, 128, %s19, [#allocation4]
    $region5: #{tpu_custom_call.1} parent=1 // pred_fallthru
      _
    // Predicated region
    $region6: #{tpu_custom_call.1} parent=1 // pred_check
      _
    $region7: #{tpu_custom_call.1} parent=1 // pred_check_branch
      %23 = sbr.rel (0) target = $region9
    $region8: #{tpu_custom_call.1} parent=1 // pred_region
      %s25 = ssub.s32 2048, 2048
      %26 = vsyncadd [#allocation7], %s25
      %s27 = sshll.u32 [#allocation6], 4
      %s28 = int_to_ptr.vmem [resolvable:$true] %s27
      %33 = dma.hbm_to_vmem [thread:$0]  %s1, 2048, %s28, [#allocation7], 128, 128, 8
    $region9: #{tpu_custom_call.1} parent=1 // pred_fallthru
      _
    // Predicated region
    $region10: #{tpu_custom_call.1} parent=1 // pred_check
      _
    $region11: #{tpu_custom_call.1} parent=1 // pred_check_branch
      %35 = sbr.rel (0) target = $region13
    $region12: #{tpu_custom_call.1} parent=1 // pred_region
      %s37 = ssub.s32 2048, 2048
      %38 = vsyncadd [#allocation7], %s37
      %s39 = sshll.u32 [#allocation8], 4
      %s40 = int_to_ptr.vmem [resolvable:$true] %s39
      %45 = dma.hbm_to_vmem [thread:$0]  %s2, 2048, %s40, [#allocation7], 128, 128, 8
    $region13: #{tpu_custom_call.1} parent=1 // pred_fallthru
      _
    // Predicated region
    $region14: #{tpu_custom_call.1} parent=1 // pred_check
      _
    $region15: #{tpu_custom_call.1} parent=1 // pred_check_branch
      %47 = sbr.rel (0) target = $region17
    $region16: #{tpu_custom_call.1} parent=1 // pred_region
      _
    $region17: #{tpu_custom_call.1} parent=1 // pred_fallthru
      _
    // Predicated region
    $region18: #{tpu_custom_call.1} parent=1 // pred_check
      _
    $region19: #{tpu_custom_call.1} parent=1 // pred_check_branch
      %49 = sbr.rel (0) target = $region21
    $region20: #{tpu_custom_call.1} parent=1 // pred_region
      %50 = dma.done [#allocation4], 128
    $region21: #{tpu_custom_call.1} parent=1 // pred_fallthru
      _
    // Predicated region
    $region22: #{tpu_custom_call.1} parent=1 // pred_check
      _
    $region23: #{tpu_custom_call.1} parent=1 // pred_check_branch
      %52 = sbr.rel (0) target = $region25
    $region24: #{tpu_custom_call.1} parent=1 // pred_region
      %53 = dma.done [#allocation7], 2048
    $region25: #{tpu_custom_call.1} parent=1 // pred_fallthru
      _
    // Predicated region
    $region26: #{tpu_custom_call.1} parent=1 // pred_check
      _
    $region27: #{tpu_custom_call.1} parent=1 // pred_check_branch
      %55 = sbr.rel (0) target = $region29
    $region28: #{tpu_custom_call.1} parent=1 // pred_region
      %56 = dma.done [#allocation7], 2048
    $region29: #{tpu_custom_call.1} parent=1 // pred_fallthru
      _
    %p57 = scmp.eq.s32.totalorder 0, 0
    // Predicated region
    $region30: #{tpu_custom_call.1} parent=1 // pred_check
      %p58 = pneg %p57
    $region31: #{tpu_custom_call.1} parent=1 // pred_check_branch
      %60 = sbr.rel (%p58) target = $region33
    $region32: #{tpu_custom_call.1} parent=1 // pred_region
      %61 = vst [vmem:[#allocation2] sm:$0xff] 0.0
    $region33: #{tpu_custom_call.1} parent=1 // pred_fallthru
      _
    %v62 = vld [vmem:[#allocation3] sm:$0xff]
    %v63 = vlaneseq
    %v64 = vand.u32 %v63, 127
    %v65 = vlaneseq
    %v66 = vshrl.u32 %v65, 7
    %v67 = vsub.s32 0, %v66
    %v68 = vrot.slane %v62, %v67
    %70 = vbcast.lane.b32.xlu0 %v68, 256
    %v71 = vpop.permute.xlu0 %70
    %s73 = sor.u32 256, 8
    %74 = vbcast.lane.b32.xlu0 %v68, %s73
    %v75 = vpop.permute.xlu0 %74
    %s77 = sor.u32 256, 16
    %78 = vbcast.lane.b32.xlu0 %v68, %s77
    %v79 = vpop.permute.xlu0 %78
    %s81 = sor.u32 256, 24
    %82 = vbcast.lane.b32.xlu0 %v68, %s81
    %v83 = vpop.permute.xlu0 %82
    %s85 = sor.u32 256, 32
    %86 = vbcast.lane.b32.xlu0 %v68, %s85
    %v87 = vpop.permute.xlu0 %86
    %s89 = sor.u32 256, 40
    %90 = vbcast.lane.b32.xlu0 %v68, %s89
    %v91 = vpop.permute.xlu0 %90
    %s93 = sor.u32 256, 48
    %94 = vbcast.lane.b32.xlu0 %v68, %s93
    %v95 = vpop.permute.xlu0 %94
    %s97 = sor.u32 256, 56
    %98 = vbcast.lane.b32.xlu0 %v68, %s97
    %v99 = vpop.permute.xlu0 %98
    %s101 = sor.u32 256, 64
    %102 = vbcast.lane.b32.xlu0 %v68, %s101
    %v103 = vpop.permute.xlu0 %102
    %s105 = sor.u32 256, 72
    %106 = vbcast.lane.b32.xlu0 %v68, %s105
    %v107 = vpop.permute.xlu0 %106
    %s109 = sor.u32 256, 80
    %110 = vbcast.lane.b32.xlu0 %v68, %s109
    %v111 = vpop.permute.xlu0 %110
    %s113 = sor.u32 256, 88
    %114 = vbcast.lane.b32.xlu0 %v68, %s113
    %v115 = vpop.permute.xlu0 %114
    %s117 = sor.u32 256, 96
    %118 = vbcast.lane.b32.xlu0 %v68, %s117
    %v119 = vpop.permute.xlu0 %118
    %s121 = sor.u32 256, 104
    %122 = vbcast.lane.b32.xlu0 %v68, %s121
    %v123 = vpop.permute.xlu0 %122
    %s125 = sor.u32 256, 112
    %126 = vbcast.lane.b32.xlu0 %v68, %s125
    %v127 = vpop.permute.xlu0 %126
    %s129 = sor.u32 256, 120
    %130 = vbcast.lane.b32.xlu0 %v68, %s129
    %v131 = vpop.permute.xlu0 %130
    %v132 = vlaneseq
    %v133 = vshrl.u32 %v132, 7
    %v134 = vsub.s32 1, %v133
    %v135 = vrot.slane %v62, %v134
    %137 = vbcast.lane.b32.xlu0 %v135, 256
    %v138 = vpop.permute.xlu0 %137
    %s140 = sor.u32 256, 8
    %141 = vbcast.lane.b32.xlu0 %v135, %s140
    %v142 = vpop.permute.xlu0 %141
    %s144 = sor.u32 256, 16
    %145 = vbcast.lane.b32.xlu0 %v135, %s144
    %v146 = vpop.permute.xlu0 %145
    %s148 = sor.u32 256, 24
    %149 = vbcast.lane.b32.xlu0 %v135, %s148
    %v150 = vpop.permute.xlu0 %149
    %s152 = sor.u32 256, 32
    %153 = vbcast.lane.b32.xlu0 %v135, %s152
    %v154 = vpop.permute.xlu0 %153
    %s156 = sor.u32 256, 40
    %157 = vbcast.lane.b32.xlu0 %v135, %s156
    %v158 = vpop.permute.xlu0 %157
    %s160 = sor.u32 256, 48
    %161 = vbcast.lane.b32.xlu0 %v135, %s160
    %v162 = vpop.permute.xlu0 %161
    %s164 = sor.u32 256, 56
    %165 = vbcast.lane.b32.xlu0 %v135, %s164
    %v166 = vpop.permute.xlu0 %165
    %s168 = sor.u32 256, 64
    %169 = vbcast.lane.b32.xlu0 %v135, %s168
    %v170 = vpop.permute.xlu0 %169
    %s172 = sor.u32 256, 72
    %173 = vbcast.lane.b32.xlu0 %v135, %s172
    %v174 = vpop.permute.xlu0 %173
    %s176 = sor.u32 256, 80
    %177 = vbcast.lane.b32.xlu0 %v135, %s176
    %v178 = vpop.permute.xlu0 %177
    %s180 = sor.u32 256, 88
    %181 = vbcast.lane.b32.xlu0 %v135, %s180
    %v182 = vpop.permute.xlu0 %181
    %s184 = sor.u32 256, 96
    %185 = vbcast.lane.b32.xlu0 %v135, %s184
    %v186 = vpop.permute.xlu0 %185
    %s188 = sor.u32 256, 104
    %189 = vbcast.lane.b32.xlu0 %v135, %s188
    %v190 = vpop.permute.xlu0 %189
    %s192 = sor.u32 256, 112
    %193 = vbcast.lane.b32.xlu0 %v135, %s192
    %v194 = vpop.permute.xlu0 %193
    %s196 = sor.u32 256, 120
    %197 = vbcast.lane.b32.xlu0 %v135, %s196
    %v198 = vpop.permute.xlu0 %197
    %v199 = vlaneseq
    %v200 = vshrl.u32 %v199, 7
    %v201 = vsub.s32 2, %v200
    %v202 = vrot.slane %v62, %v201
    %204 = vbcast.lane.b32.xlu0 %v202, 256
    %v205 = vpop.permute.xlu0 %204
    %s207 = sor.u32 256, 8
    %208 = vbcast.lane.b32.xlu0 %v202, %s207
    %v209 = vpop.permute.xlu0 %208
    %s211 = sor.u32 256, 16
    %212 = vbcast.lane.b32.xlu0 %v202, %s211
    %v213 = vpop.permute.xlu0 %212
    %s215 = sor.u32 256, 24
    %216 = vbcast.lane.b32.xlu0 %v202, %s215
    %v217 = vpop.permute.xlu0 %216
    %s219 = sor.u32 256, 32
    %220 = vbcast.lane.b32.xlu0 %v202, %s219
    %v221 = vpop.permute.xlu0 %220
    %s223 = sor.u32 256, 40
    %224 = vbcast.lane.b32.xlu0 %v202, %s223
    %v225 = vpop.permute.xlu0 %224
    %s227 = sor.u32 256, 48
    %228 = vbcast.lane.b32.xlu0 %v202, %s227
    %v229 = vpop.permute.xlu0 %228
    %s231 = sor.u32 256, 56
    %232 = vbcast.lane.b32.xlu0 %v202, %s231
    %v233 = vpop.permute.xlu0 %232
    %s235 = sor.u32 256, 64
    %236 = vbcast.lane.b32.xlu0 %v202, %s235
    %v237 = vpop.permute.xlu0 %236
    %s239 = sor.u32 256, 72
    %240 = vbcast.lane.b32.xlu0 %v202, %s239
    %v241 = vpop.permute.xlu0 %240
    %s243 = sor.u32 256, 80
    %244 = vbcast.lane.b32.xlu0 %v202, %s243
    %v245 = vpop.permute.xlu0 %244
    %s247 = sor.u32 256, 88
    %248 = vbcast.lane.b32.xlu0 %v202, %s247
    %v249 = vpop.permute.xlu0 %248
    %s251 = sor.u32 256, 96
    %252 = vbcast.lane.b32.xlu0 %v202, %s251
    %v253 = vpop.permute.xlu0 %252
    %s255 = sor.u32 256, 104
    %256 = vbcast.lane.b32.xlu0 %v202, %s255
    %v257 = vpop.permute.xlu0 %256
    %s259 = sor.u32 256, 112
    %260 = vbcast.lane.b32.xlu0 %v202, %s259
    %v261 = vpop.permute.xlu0 %260
    %s263 = sor.u32 256, 120
    %264 = vbcast.lane.b32.xlu0 %v202, %s263
    %v265 = vpop.permute.xlu0 %264
    %v266 = vlaneseq
    %v267 = vshrl.u32 %v266, 7
    %v268 = vsub.s32 3, %v267
    %v269 = vrot.slane %v62, %v268
    %271 = vbcast.lane.b32.xlu0 %v269, 256
    %v272 = vpop.permute.xlu0 %271
    %s274 = sor.u32 256, 8
    %275 = vbcast.lane.b32.xlu0 %v269, %s274
    %v276 = vpop.permute.xlu0 %275
    %s278 = sor.u32 256, 16
    %279 = vbcast.lane.b32.xlu0 %v269, %s278
    %v280 = vpop.permute.xlu0 %279
    %s282 = sor.u32 256, 24
    %283 = vbcast.lane.b32.xlu0 %v269, %s282
    %v284 = vpop.permute.xlu0 %283
    %s286 = sor.u32 256, 32
    %287 = vbcast.lane.b32.xlu0 %v269, %s286
    %v288 = vpop.permute.xlu0 %287
    %s290 = sor.u32 256, 40
    %291 = vbcast.lane.b32.xlu0 %v269, %s290
    %v292 = vpop.permute.xlu0 %291
    %s294 = sor.u32 256, 48
    %295 = vbcast.lane.b32.xlu0 %v269, %s294
    %v296 = vpop.permute.xlu0 %295
    %s298 = sor.u32 256, 56
    %299 = vbcast.lane.b32.xlu0 %v269, %s298
    %v300 = vpop.permute.xlu0 %299
    %s302 = sor.u32 256, 64
    %303 = vbcast.lane.b32.xlu0 %v269, %s302
    %v304 = vpop.permute.xlu0 %303
    %s306 = sor.u32 256, 72
    %307 = vbcast.lane.b32.xlu0 %v269, %s306
    %v308 = vpop.permute.xlu0 %307
    %s310 = sor.u32 256, 80
    %311 = vbcast.lane.b32.xlu0 %v269, %s310
    %v312 = vpop.permute.xlu0 %311
    %s314 = sor.u32 256, 88
    %315 = vbcast.lane.b32.xlu0 %v269, %s314
    %v316 = vpop.permute.xlu0 %315
    %s318 = sor.u32 256, 96
    %319 = vbcast.lane.b32.xlu0 %v269, %s318
    %v320 = vpop.permute.xlu0 %319
    %s322 = sor.u32 256, 104
    %323 = vbcast.lane.b32.xlu0 %v269, %s322
    %v324 = vpop.permute.xlu0 %323
    %s326 = sor.u32 256, 112
    %327 = vbcast.lane.b32.xlu0 %v269, %s326
    %v328 = vpop.permute.xlu0 %327
    %s330 = sor.u32 256, 120
    %331 = vbcast.lane.b32.xlu0 %v269, %s330
    %v332 = vpop.permute.xlu0 %331
    %v333 = vlaneseq
    %v334 = vshrl.u32 %v333, 7
    %v335 = vsub.s32 4, %v334
    %v336 = vrot.slane %v62, %v335
    %338 = vbcast.lane.b32.xlu0 %v336, 256
    %v339 = vpop.permute.xlu0 %338
    %s341 = sor.u32 256, 8
    %342 = vbcast.lane.b32.xlu0 %v336, %s341
    %v343 = vpop.permute.xlu0 %342
    %s345 = sor.u32 256, 16
    %346 = vbcast.lane.b32.xlu0 %v336, %s345
    %v347 = vpop.permute.xlu0 %346
    %s349 = sor.u32 256, 24
    %350 = vbcast.lane.b32.xlu0 %v336, %s349
    %v351 = vpop.permute.xlu0 %350
    %s353 = sor.u32 256, 32
    %354 = vbcast.lane.b32.xlu0 %v336, %s353
    %v355 = vpop.permute.xlu0 %354
    %s357 = sor.u32 256, 40
    %358 = vbcast.lane.b32.xlu0 %v336, %s357
    %v359 = vpop.permute.xlu0 %358
    %s361 = sor.u32 256, 48
    %362 = vbcast.lane.b32.xlu0 %v336, %s361
    %v363 = vpop.permute.xlu0 %362
    %s365 = sor.u32 256, 56
    %366 = vbcast.lane.b32.xlu0 %v336, %s365
    %v367 = vpop.permute.xlu0 %366
    %s369 = sor.u32 256, 64
    %370 = vbcast.lane.b32.xlu0 %v336, %s369
    %v371 = vpop.permute.xlu0 %370
    %s373 = sor.u32 256, 72
    %374 = vbcast.lane.b32.xlu0 %v336, %s373
    %v375 = vpop.permute.xlu0 %374
    %s377 = sor.u32 256, 80
    %378 = vbcast.lane.b32.xlu0 %v336, %s377
    %v379 = vpop.permute.xlu0 %378
    %s381 = sor.u32 256, 88
    %382 = vbcast.lane.b32.xlu0 %v336, %s381
    %v383 = vpop.permute.xlu0 %382
    %s385 = sor.u32 256, 96
    %386 = vbcast.lane.b32.xlu0 %v336, %s385
    %v387 = vpop.permute.xlu0 %386
    %s389 = sor.u32 256, 104
    %390 = vbcast.lane.b32.xlu0 %v336, %s389
    %v391 = vpop.permute.xlu0 %390
    %s393 = sor.u32 256, 112
    %394 = vbcast.lane.b32.xlu0 %v336, %s393
    %v395 = vpop.permute.xlu0 %394
    %s397 = sor.u32 256, 120
    %398 = vbcast.lane.b32.xlu0 %v336, %s397
    %v399 = vpop.permute.xlu0 %398
    %v400 = vlaneseq
    %v401 = vshrl.u32 %v400, 7
    %v402 = vsub.s32 5, %v401
    %v403 = vrot.slane %v62, %v402
    %405 = vbcast.lane.b32.xlu0 %v403, 256
    %v406 = vpop.permute.xlu0 %405
    %s408 = sor.u32 256, 8
    %409 = vbcast.lane.b32.xlu0 %v403, %s408
    %v410 = vpop.permute.xlu0 %409
    %s412 = sor.u32 256, 16
    %413 = vbcast.lane.b32.xlu0 %v403, %s412
    %v414 = vpop.permute.xlu0 %413
    %s416 = sor.u32 256, 24
    %417 = vbcast.lane.b32.xlu0 %v403, %s416
    %v418 = vpop.permute.xlu0 %417
    %s420 = sor.u32 256, 32
    %421 = vbcast.lane.b32.xlu0 %v403, %s420
    %v422 = vpop.permute.xlu0 %421
    %s424 = sor.u32 256, 40
    %425 = vbcast.lane.b32.xlu0 %v403, %s424
    %v426 = vpop.permute.xlu0 %425
    %s428 = sor.u32 256, 48
    %429 = vbcast.lane.b32.xlu0 %v403, %s428
    %v430 = vpop.permute.xlu0 %429
    %s432 = sor.u32 256, 56
    %433 = vbcast.lane.b32.xlu0 %v403, %s432
    %v434 = vpop.permute.xlu0 %433
    %s436 = sor.u32 256, 64
    %437 = vbcast.lane.b32.xlu0 %v403, %s436
    %v438 = vpop.permute.xlu0 %437
    %s440 = sor.u32 256, 72
    %441 = vbcast.lane.b32.xlu0 %v403, %s440
    %v442 = vpop.permute.xlu0 %441
    %s444 = sor.u32 256, 80
    %445 = vbcast.lane.b32.xlu0 %v403, %s444
    %v446 = vpop.permute.xlu0 %445
    %s448 = sor.u32 256, 88
    %449 = vbcast.lane.b32.xlu0 %v403, %s448
    %v450 = vpop.permute.xlu0 %449
    %s452 = sor.u32 256, 96
    %453 = vbcast.lane.b32.xlu0 %v403, %s452
    %v454 = vpop.permute.xlu0 %453
    %s456 = sor.u32 256, 104
    %457 = vbcast.lane.b32.xlu0 %v403, %s456
    %v458 = vpop.permute.xlu0 %457
    %s460 = sor.u32 256, 112
    %461 = vbcast.lane.b32.xlu0 %v403, %s460
    %v462 = vpop.permute.xlu0 %461
    %s464 = sor.u32 256, 120
    %465 = vbcast.lane.b32.xlu0 %v403, %s464
    %v466 = vpop.permute.xlu0 %465
    %v467 = vlaneseq
    %v468 = vshrl.u32 %v467, 7
    %v469 = vsub.s32 6, %v468
    %v470 = vrot.slane %v62, %v469
    %472 = vbcast.lane.b32.xlu0 %v470, 256
    %v473 = vpop.permute.xlu0 %472
    %s475 = sor.u32 256, 8
    %476 = vbcast.lane.b32.xlu0 %v470, %s475
    %v477 = vpop.permute.xlu0 %476
    %s479 = sor.u32 256, 16
    %480 = vbcast.lane.b32.xlu0 %v470, %s479
    %v481 = vpop.permute.xlu0 %480
    %s483 = sor.u32 256, 24
    %484 = vbcast.lane.b32.xlu0 %v470, %s483
    %v485 = vpop.permute.xlu0 %484
    %s487 = sor.u32 256, 32
    %488 = vbcast.lane.b32.xlu0 %v470, %s487
    %v489 = vpop.permute.xlu0 %488
    %s491 = sor.u32 256, 40
    %492 = vbcast.lane.b32.xlu0 %v470, %s491
    %v493 = vpop.permute.xlu0 %492
    %s495 = sor.u32 256, 48
    %496 = vbcast.lane.b32.xlu0 %v470, %s495
    %v497 = vpop.permute.xlu0 %496
    %s499 = sor.u32 256, 56
    %500 = vbcast.lane.b32.xlu0 %v470, %s499
    %v501 = vpop.permute.xlu0 %500
    %s503 = sor.u32 256, 64
    %504 = vbcast.lane.b32.xlu0 %v470, %s503
    %v505 = vpop.permute.xlu0 %504
    %s507 = sor.u32 256, 72
    %508 = vbcast.lane.b32.xlu0 %v470, %s507
    %v509 = vpop.permute.xlu0 %508
    %s511 = sor.u32 256, 80
    %512 = vbcast.lane.b32.xlu0 %v470, %s511
    %v513 = vpop.permute.xlu0 %512
    %s515 = sor.u32 256, 88
    %516 = vbcast.lane.b32.xlu0 %v470, %s515
    %v517 = vpop.permute.xlu0 %516
    %s519 = sor.u32 256, 96
    %520 = vbcast.lane.b32.xlu0 %v470, %s519
    %v521 = vpop.permute.xlu0 %520
    %s523 = sor.u32 256, 104
    %524 = vbcast.lane.b32.xlu0 %v470, %s523
    %v525 = vpop.permute.xlu0 %524
    %s527 = sor.u32 256, 112
    %528 = vbcast.lane.b32.xlu0 %v470, %s527
    %v529 = vpop.permute.xlu0 %528
    %s531 = sor.u32 256, 120
    %532 = vbcast.lane.b32.xlu0 %v470, %s531
    %v533 = vpop.permute.xlu0 %532
    %v534 = vlaneseq
    %v535 = vshrl.u32 %v534, 7
    %v536 = vsub.s32 7, %v535
    %v537 = vrot.slane %v62, %v536
    %539 = vbcast.lane.b32.xlu0 %v537, 256
    %v540 = vpop.permute.xlu0 %539
    %s542 = sor.u32 256, 8
    %543 = vbcast.lane.b32.xlu0 %v537, %s542
    %v544 = vpop.permute.xlu0 %543
    %s546 = sor.u32 256, 16
    %547 = vbcast.lane.b32.xlu0 %v537, %s546
    %v548 = vpop.permute.xlu0 %547
    %s550 = sor.u32 256, 24
    %551 = vbcast.lane.b32.xlu0 %v537, %s550
    %v552 = vpop.permute.xlu0 %551
    %s554 = sor.u32 256, 32
    %555 = vbcast.lane.b32.xlu0 %v537, %s554
    %v556 = vpop.permute.xlu0 %555
    %s558 = sor.u32 256, 40
    %559 = vbcast.lane.b32.xlu0 %v537, %s558
    %v560 = vpop.permute.xlu0 %559
    %s562 = sor.u32 256, 48
    %563 = vbcast.lane.b32.xlu0 %v537, %s562
    %v564 = vpop.permute.xlu0 %563
    %s566 = sor.u32 256, 56
    %567 = vbcast.lane.b32.xlu0 %v537, %s566
    %v568 = vpop.permute.xlu0 %567
    %s570 = sor.u32 256, 64
    %571 = vbcast.lane.b32.xlu0 %v537, %s570
    %v572 = vpop.permute.xlu0 %571
    %s574 = sor.u32 256, 72
    %575 = vbcast.lane.b32.xlu0 %v537, %s574
    %v576 = vpop.permute.xlu0 %575
    %s578 = sor.u32 256, 80
    %579 = vbcast.lane.b32.xlu0 %v537, %s578
    %v580 = vpop.permute.xlu0 %579
    %s582 = sor.u32 256, 88
    %583 = vbcast.lane.b32.xlu0 %v537, %s582
    %v584 = vpop.permute.xlu0 %583
    %s586 = sor.u32 256, 96
    %587 = vbcast.lane.b32.xlu0 %v537, %s586
    %v588 = vpop.permute.xlu0 %587
    %s590 = sor.u32 256, 104
    %591 = vbcast.lane.b32.xlu0 %v537, %s590
    %v592 = vpop.permute.xlu0 %591
    %s594 = sor.u32 256, 112
    %595 = vbcast.lane.b32.xlu0 %v537, %s594
    %v596 = vpop.permute.xlu0 %595
    %s598 = sor.u32 256, 120
    %599 = vbcast.lane.b32.xlu0 %v537, %s598
    %v600 = vpop.permute.xlu0 %599
    %vm601 = vcmp.eq.s32.totalorder %v71, %v64
    %vm602 = vcmp.eq.s32.totalorder %v75, %v64
    %vm603 = vcmp.eq.s32.totalorder %v79, %v64
    %vm604 = vcmp.eq.s32.totalorder %v83, %v64
    %vm605 = vcmp.eq.s32.totalorder %v87, %v64
    %vm606 = vcmp.eq.s32.totalorder %v91, %v64
    %vm607 = vcmp.eq.s32.totalorder %v95, %v64
    %vm608 = vcmp.eq.s32.totalorder %v99, %v64
    %vm609 = vcmp.eq.s32.totalorder %v103, %v64
    %vm610 = vcmp.eq.s32.totalorder %v107, %v64
    %vm611 = vcmp.eq.s32.totalorder %v111, %v64
    %vm612 = vcmp.eq.s32.totalorder %v115, %v64
    %vm613 = vcmp.eq.s32.totalorder %v119, %v64
    %vm614 = vcmp.eq.s32.totalorder %v123, %v64
    %vm615 = vcmp.eq.s32.totalorder %v127, %v64
    %vm616 = vcmp.eq.s32.totalorder %v131, %v64
    %vm617 = vcmp.eq.s32.totalorder %v138, %v64
    %vm618 = vcmp.eq.s32.totalorder %v142, %v64
    %vm619 = vcmp.eq.s32.totalorder %v146, %v64
    %vm620 = vcmp.eq.s32.totalorder %v150, %v64
    %vm621 = vcmp.eq.s32.totalorder %v154, %v64
    %vm622 = vcmp.eq.s32.totalorder %v158, %v64
    %vm623 = vcmp.eq.s32.totalorder %v162, %v64
    %vm624 = vcmp.eq.s32.totalorder %v166, %v64
    %vm625 = vcmp.eq.s32.totalorder %v170, %v64
    %vm626 = vcmp.eq.s32.totalorder %v174, %v64
    %vm627 = vcmp.eq.s32.totalorder %v178, %v64
    %vm628 = vcmp.eq.s32.totalorder %v182, %v64
    %vm629 = vcmp.eq.s32.totalorder %v186, %v64
    %vm630 = vcmp.eq.s32.totalorder %v190, %v64
    %vm631 = vcmp.eq.s32.totalorder %v194, %v64
    %vm632 = vcmp.eq.s32.totalorder %v198, %v64
    %vm633 = vcmp.eq.s32.totalorder %v205, %v64
    %vm634 = vcmp.eq.s32.totalorder %v209, %v64
    %vm635 = vcmp.eq.s32.totalorder %v213, %v64
    %vm636 = vcmp.eq.s32.totalorder %v217, %v64
    %vm637 = vcmp.eq.s32.totalorder %v221, %v64
    %vm638 = vcmp.eq.s32.totalorder %v225, %v64
    %vm639 = vcmp.eq.s32.totalorder %v229, %v64
    %vm640 = vcmp.eq.s32.totalorder %v233, %v64
    %vm641 = vcmp.eq.s32.totalorder %v237, %v64
    %vm642 = vcmp.eq.s32.totalorder %v241, %v64
    %vm643 = vcmp.eq.s32.totalorder %v245, %v64
    %vm644 = vcmp.eq.s32.totalorder %v249, %v64
    %vm645 = vcmp.eq.s32.totalorder %v253, %v64
    %vm646 = vcmp.eq.s32.totalorder %v257, %v64
    %vm647 = vcmp.eq.s32.totalorder %v261, %v64
    %vm648 = vcmp.eq.s32.totalorder %v265, %v64
    %vm649 = vcmp.eq.s32.totalorder %v272, %v64
    %vm650 = vcmp.eq.s32.totalorder %v276, %v64
    %vm651 = vcmp.eq.s32.totalorder %v280, %v64
    %vm652 = vcmp.eq.s32.totalorder %v284, %v64
    %vm653 = vcmp.eq.s32.totalorder %v288, %v64
    %vm654 = vcmp.eq.s32.totalorder %v292, %v64
    %vm655 = vcmp.eq.s32.totalorder %v296, %v64
    %vm656 = vcmp.eq.s32.totalorder %v300, %v64
    %vm657 = vcmp.eq.s32.totalorder %v304, %v64
    %vm658 = vcmp.eq.s32.totalorder %v308, %v64
    %vm659 = vcmp.eq.s32.totalorder %v312, %v64
    %vm660 = vcmp.eq.s32.totalorder %v316, %v64
    %vm661 = vcmp.eq.s32.totalorder %v320, %v64
    %vm662 = vcmp.eq.s32.totalorder %v324, %v64
    %vm663 = vcmp.eq.s32.totalorder %v328, %v64
    %vm664 = vcmp.eq.s32.totalorder %v332, %v64
    %vm665 = vcmp.eq.s32.totalorder %v339, %v64
    %vm666 = vcmp.eq.s32.totalorder %v343, %v64
    %vm667 = vcmp.eq.s32.totalorder %v347, %v64
    %vm668 = vcmp.eq.s32.totalorder %v351, %v64
    %vm669 = vcmp.eq.s32.totalorder %v355, %v64
    %vm670 = vcmp.eq.s32.totalorder %v359, %v64
    %vm671 = vcmp.eq.s32.totalorder %v363, %v64
    %vm672 = vcmp.eq.s32.totalorder %v367, %v64
    %vm673 = vcmp.eq.s32.totalorder %v371, %v64
    %vm674 = vcmp.eq.s32.totalorder %v375, %v64
    %vm675 = vcmp.eq.s32.totalorder %v379, %v64
    %vm676 = vcmp.eq.s32.totalorder %v383, %v64
    %vm677 = vcmp.eq.s32.totalorder %v387, %v64
    %vm678 = vcmp.eq.s32.totalorder %v391, %v64
    %vm679 = vcmp.eq.s32.totalorder %v395, %v64
    %vm680 = vcmp.eq.s32.totalorder %v399, %v64
    %vm681 = vcmp.eq.s32.totalorder %v406, %v64
    %vm682 = vcmp.eq.s32.totalorder %v410, %v64
    %vm683 = vcmp.eq.s32.totalorder %v414, %v64
    %vm684 = vcmp.eq.s32.totalorder %v418, %v64
    %vm685 = vcmp.eq.s32.totalorder %v422, %v64
    %vm686 = vcmp.eq.s32.totalorder %v426, %v64
    %vm687 = vcmp.eq.s32.totalorder %v430, %v64
    %vm688 = vcmp.eq.s32.totalorder %v434, %v64
    %vm689 = vcmp.eq.s32.totalorder %v438, %v64
    %vm690 = vcmp.eq.s32.totalorder %v442, %v64
    %vm691 = vcmp.eq.s32.totalorder %v446, %v64
    %vm692 = vcmp.eq.s32.totalorder %v450, %v64
    %vm693 = vcmp.eq.s32.totalorder %v454, %v64
    %vm694 = vcmp.eq.s32.totalorder %v458, %v64
    %vm695 = vcmp.eq.s32.totalorder %v462, %v64
    %vm696 = vcmp.eq.s32.totalorder %v466, %v64
    %vm697 = vcmp.eq.s32.totalorder %v473, %v64
    %vm698 = vcmp.eq.s32.totalorder %v477, %v64
    %vm699 = vcmp.eq.s32.totalorder %v481, %v64
    %vm700 = vcmp.eq.s32.totalorder %v485, %v64
    %vm701 = vcmp.eq.s32.totalorder %v489, %v64
    %vm702 = vcmp.eq.s32.totalorder %v493, %v64
    %vm703 = vcmp.eq.s32.totalorder %v497, %v64
    %vm704 = vcmp.eq.s32.totalorder %v501, %v64
    %vm705 = vcmp.eq.s32.totalorder %v505, %v64
    %vm706 = vcmp.eq.s32.totalorder %v509, %v64
    %vm707 = vcmp.eq.s32.totalorder %v513, %v64
    %vm708 = vcmp.eq.s32.totalorder %v517, %v64
    %vm709 = vcmp.eq.s32.totalorder %v521, %v64
    %vm710 = vcmp.eq.s32.totalorder %v525, %v64
    %vm711 = vcmp.eq.s32.totalorder %v529, %v64
    %vm712 = vcmp.eq.s32.totalorder %v533, %v64
    %vm713 = vcmp.eq.s32.totalorder %v540, %v64
    %vm714 = vcmp.eq.s32.totalorder %v544, %v64
    %vm715 = vcmp.eq.s32.totalorder %v548, %v64
    %vm716 = vcmp.eq.s32.totalorder %v552, %v64
    %vm717 = vcmp.eq.s32.totalorder %v556, %v64
    %vm718 = vcmp.eq.s32.totalorder %v560, %v64
    %vm719 = vcmp.eq.s32.totalorder %v564, %v64
    %vm720 = vcmp.eq.s32.totalorder %v568, %v64
    %vm721 = vcmp.eq.s32.totalorder %v572, %v64
    %vm722 = vcmp.eq.s32.totalorder %v576, %v64
    %vm723 = vcmp.eq.s32.totalorder %v580, %v64
    %vm724 = vcmp.eq.s32.totalorder %v584, %v64
    %vm725 = vcmp.eq.s32.totalorder %v588, %v64
    %vm726 = vcmp.eq.s32.totalorder %v592, %v64
    %vm727 = vcmp.eq.s32.totalorder %v596, %v64
    %vm728 = vcmp.eq.s32.totalorder %v600, %v64
    %v729 = vsel %vm601, 1, 0
    %v730 = vsel %vm602, 1, 0
    %v731 = vsel %vm603, 1, 0
    %v732 = vsel %vm604, 1, 0
    %v733 = vsel %vm605, 1, 0
    %v734 = vsel %vm606, 1, 0
    %v735 = vsel %vm607, 1, 0
    %v736 = vsel %vm608, 1, 0
    %v737 = vsel %vm609, 1, 0
    %v738 = vsel %vm610, 1, 0
    %v739 = vsel %vm611, 1, 0
    %v740 = vsel %vm612, 1, 0
    %v741 = vsel %vm613, 1, 0
    %v742 = vsel %vm614, 1, 0
    %v743 = vsel %vm615, 1, 0
    %v744 = vsel %vm616, 1, 0
    %v745 = vsel %vm617, 1, 0
    %v746 = vsel %vm618, 1, 0
    %v747 = vsel %vm619, 1, 0
    %v748 = vsel %vm620, 1, 0
    %v749 = vsel %vm621, 1, 0
    %v750 = vsel %vm622, 1, 0
    %v751 = vsel %vm623, 1, 0
    %v752 = vsel %vm624, 1, 0
    %v753 = vsel %vm625, 1, 0
    %v754 = vsel %vm626, 1, 0
    %v755 = vsel %vm627, 1, 0
    %v756 = vsel %vm628, 1, 0
    %v757 = vsel %vm629, 1, 0
    %v758 = vsel %vm630, 1, 0
    %v759 = vsel %vm631, 1, 0
    %v760 = vsel %vm632, 1, 0
    %v761 = vsel %vm633, 1, 0
    %v762 = vsel %vm634, 1, 0
    %v763 = vsel %vm635, 1, 0
    %v764 = vsel %vm636, 1, 0
    %v765 = vsel %vm637, 1, 0
    %v766 = vsel %vm638, 1, 0
    %v767 = vsel %vm639, 1, 0
    %v768 = vsel %vm640, 1, 0
    %v769 = vsel %vm641, 1, 0
    %v770 = vsel %vm642, 1, 0
    %v771 = vsel %vm643, 1, 0
    %v772 = vsel %vm644, 1, 0
    %v773 = vsel %vm645, 1, 0
    %v774 = vsel %vm646, 1, 0
    %v775 = vsel %vm647, 1, 0
    %v776 = vsel %vm648, 1, 0
    %v777 = vsel %vm649, 1, 0
    %v778 = vsel %vm650, 1, 0
    %v779 = vsel %vm651, 1, 0
    %v780 = vsel %vm652, 1, 0
    %v781 = vsel %vm653, 1, 0
    %v782 = vsel %vm654, 1, 0
    %v783 = vsel %vm655, 1, 0
    %v784 = vsel %vm656, 1, 0
    %v785 = vsel %vm657, 1, 0
    %v786 = vsel %vm658, 1, 0
    %v787 = vsel %vm659, 1, 0
    %v788 = vsel %vm660, 1, 0
    %v789 = vsel %vm661, 1, 0
    %v790 = vsel %vm662, 1, 0
    %v791 = vsel %vm663, 1, 0
    %v792 = vsel %vm664, 1, 0
    %v793 = vsel %vm665, 1, 0
    %v794 = vsel %vm666, 1, 0
    %v795 = vsel %vm667, 1, 0
    %v796 = vsel %vm668, 1, 0
    %v797 = vsel %vm669, 1, 0
    %v798 = vsel %vm670, 1, 0
    %v799 = vsel %vm671, 1, 0
    %v800 = vsel %vm672, 1, 0
    %v801 = vsel %vm673, 1, 0
    %v802 = vsel %vm674, 1, 0
    %v803 = vsel %vm675, 1, 0
    %v804 = vsel %vm676, 1, 0
    %v805 = vsel %vm677, 1, 0
    %v806 = vsel %vm678, 1, 0
    %v807 = vsel %vm679, 1, 0
    %v808 = vsel %vm680, 1, 0
    %v809 = vsel %vm681, 1, 0
    %v810 = vsel %vm682, 1, 0
    %v811 = vsel %vm683, 1, 0
    %v812 = vsel %vm684, 1, 0
    %v813 = vsel %vm685, 1, 0
    %v814 = vsel %vm686, 1, 0
    %v815 = vsel %vm687, 1, 0
    %v816 = vsel %vm688, 1, 0
    %v817 = vsel %vm689, 1, 0
    %v818 = vsel %vm690, 1, 0
    %v819 = vsel %vm691, 1, 0
    %v820 = vsel %vm692, 1, 0
    %v821 = vsel %vm693, 1, 0
    %v822 = vsel %vm694, 1, 0
    %v823 = vsel %vm695, 1, 0
    %v824 = vsel %vm696, 1, 0
    %v825 = vsel %vm697, 1, 0
    %v826 = vsel %vm698, 1, 0
    %v827 = vsel %vm699, 1, 0
    %v828 = vsel %vm700, 1, 0
    %v829 = vsel %vm701, 1, 0
    %v830 = vsel %vm702, 1, 0
    %v831 = vsel %vm703, 1, 0
    %v832 = vsel %vm704, 1, 0
    %v833 = vsel %vm705, 1, 0
    %v834 = vsel %vm706, 1, 0
    %v835 = vsel %vm707, 1, 0
    %v836 = vsel %vm708, 1, 0
    %v837 = vsel %vm709, 1, 0
    %v838 = vsel %vm710, 1, 0
    %v839 = vsel %vm711, 1, 0
    %v840 = vsel %vm712, 1, 0
    %v841 = vsel %vm713, 1, 0
    %v842 = vsel %vm714, 1, 0
    %v843 = vsel %vm715, 1, 0
    %v844 = vsel %vm716, 1, 0
    %v845 = vsel %vm717, 1, 0
    %v846 = vsel %vm718, 1, 0
    %v847 = vsel %vm719, 1, 0
    %v848 = vsel %vm720, 1, 0
    %v849 = vsel %vm721, 1, 0
    %v850 = vsel %vm722, 1, 0
    %v851 = vsel %vm723, 1, 0
    %v852 = vsel %vm724, 1, 0
    %v853 = vsel %vm725, 1, 0
    %v854 = vsel %vm726, 1, 0
    %v855 = vsel %vm727, 1, 0
    %v856 = vsel %vm728, 1, 0
    %v857 = vcvt.s32.f32 %v729
    %v858 = vcvt.s32.f32 %v730
    %v859 = vcvt.s32.f32 %v731
    %v860 = vcvt.s32.f32 %v732
    %v861 = vcvt.s32.f32 %v733
    %v862 = vcvt.s32.f32 %v734
    %v863 = vcvt.s32.f32 %v735
    %v864 = vcvt.s32.f32 %v736
    %v865 = vcvt.s32.f32 %v737
    %v866 = vcvt.s32.f32 %v738
    %v867 = vcvt.s32.f32 %v739
    %v868 = vcvt.s32.f32 %v740
    %v869 = vcvt.s32.f32 %v741
    %v870 = vcvt.s32.f32 %v742
    %v871 = vcvt.s32.f32 %v743
    %v872 = vcvt.s32.f32 %v744
    %v873 = vcvt.s32.f32 %v745
    %v874 = vcvt.s32.f32 %v746
    %v875 = vcvt.s32.f32 %v747
    %v876 = vcvt.s32.f32 %v748
    %v877 = vcvt.s32.f32 %v749
    %v878 = vcvt.s32.f32 %v750
    %v879 = vcvt.s32.f32 %v751
    %v880 = vcvt.s32.f32 %v752
    %v881 = vcvt.s32.f32 %v753
    %v882 = vcvt.s32.f32 %v754
    %v883 = vcvt.s32.f32 %v755
    %v884 = vcvt.s32.f32 %v756
    %v885 = vcvt.s32.f32 %v757
    %v886 = vcvt.s32.f32 %v758
    %v887 = vcvt.s32.f32 %v759
    %v888 = vcvt.s32.f32 %v760
    %v889 = vcvt.s32.f32 %v761
    %v890 = vcvt.s32.f32 %v762
    %v891 = vcvt.s32.f32 %v763
    %v892 = vcvt.s32.f32 %v764
    %v893 = vcvt.s32.f32 %v765
    %v894 = vcvt.s32.f32 %v766
    %v895 = vcvt.s32.f32 %v767
    %v896 = vcvt.s32.f32 %v768
    %v897 = vcvt.s32.f32 %v769
    %v898 = vcvt.s32.f32 %v770
    %v899 = vcvt.s32.f32 %v771
    %v900 = vcvt.s32.f32 %v772
    %v901 = vcvt.s32.f32 %v773
    %v902 = vcvt.s32.f32 %v774
    %v903 = vcvt.s32.f32 %v775
    %v904 = vcvt.s32.f32 %v776
    %v905 = vcvt.s32.f32 %v777
    %v906 = vcvt.s32.f32 %v778
    %v907 = vcvt.s32.f32 %v779
    %v908 = vcvt.s32.f32 %v780
    %v909 = vcvt.s32.f32 %v781
    %v910 = vcvt.s32.f32 %v782
    %v911 = vcvt.s32.f32 %v783
    %v912 = vcvt.s32.f32 %v784
    %v913 = vcvt.s32.f32 %v785
    %v914 = vcvt.s32.f32 %v786
    %v915 = vcvt.s32.f32 %v787
    %v916 = vcvt.s32.f32 %v788
    %v917 = vcvt.s32.f32 %v789
    %v918 = vcvt.s32.f32 %v790
    %v919 = vcvt.s32.f32 %v791
    %v920 = vcvt.s32.f32 %v792
    %v921 = vcvt.s32.f32 %v793
    %v922 = vcvt.s32.f32 %v794
    %v923 = vcvt.s32.f32 %v795
    %v924 = vcvt.s32.f32 %v796
    %v925 = vcvt.s32.f32 %v797
    %v926 = vcvt.s32.f32 %v798
    %v927 = vcvt.s32.f32 %v799
    %v928 = vcvt.s32.f32 %v800
    %v929 = vcvt.s32.f32 %v801
    %v930 = vcvt.s32.f32 %v802
    %v931 = vcvt.s32.f32 %v803
    %v932 = vcvt.s32.f32 %v804
    %v933 = vcvt.s32.f32 %v805
    %v934 = vcvt.s32.f32 %v806
    %v935 = vcvt.s32.f32 %v807
    %v936 = vcvt.s32.f32 %v808
    %v937 = vcvt.s32.f32 %v809
    %v938 = vcvt.s32.f32 %v810
    %v939 = vcvt.s32.f32 %v811
    %v940 = vcvt.s32.f32 %v812
    %v941 = vcvt.s32.f32 %v813
    %v942 = vcvt.s32.f32 %v814
    %v943 = vcvt.s32.f32 %v815
    %v944 = vcvt.s32.f32 %v816
    %v945 = vcvt.s32.f32 %v817
    %v946 = vcvt.s32.f32 %v818
    %v947 = vcvt.s32.f32 %v819
    %v948 = vcvt.s32.f32 %v820
    %v949 = vcvt.s32.f32 %v821
    %v950 = vcvt.s32.f32 %v822
    %v951 = vcvt.s32.f32 %v823
    %v952 = vcvt.s32.f32 %v824
    %v953 = vcvt.s32.f32 %v825
    %v954 = vcvt.s32.f32 %v826
    %v955 = vcvt.s32.f32 %v827
    %v956 = vcvt.s32.f32 %v828
    %v957 = vcvt.s32.f32 %v829
    %v958 = vcvt.s32.f32 %v830
    %v959 = vcvt.s32.f32 %v831
    %v960 = vcvt.s32.f32 %v832
    %v961 = vcvt.s32.f32 %v833
    %v962 = vcvt.s32.f32 %v834
    %v963 = vcvt.s32.f32 %v835
    %v964 = vcvt.s32.f32 %v836
    %v965 = vcvt.s32.f32 %v837
    %v966 = vcvt.s32.f32 %v838
    %v967 = vcvt.s32.f32 %v839
    %v968 = vcvt.s32.f32 %v840
    %v969 = vcvt.s32.f32 %v841
    %v970 = vcvt.s32.f32 %v842
    %v971 = vcvt.s32.f32 %v843
    %v972 = vcvt.s32.f32 %v844
    %v973 = vcvt.s32.f32 %v845
    %v974 = vcvt.s32.f32 %v846
    %v975 = vcvt.s32.f32 %v847
    %v976 = vcvt.s32.f32 %v848
    %v977 = vcvt.s32.f32 %v849
    %v978 = vcvt.s32.f32 %v850
    %v979 = vcvt.s32.f32 %v851
    %v980 = vcvt.s32.f32 %v852
    %v981 = vcvt.s32.f32 %v853
    %v982 = vcvt.s32.f32 %v854
    %v983 = vcvt.s32.f32 %v855
    %v984 = vcvt.s32.f32 %v856
    %v985 = vld [vmem:[#allocation2] sm:$0xff]
    %v986 = vadd.f32 %v857, %v858
    %v987 = vadd.f32 %v986, %v859
    %v988 = vadd.f32 %v987, %v860
    %v989 = vadd.f32 %v988, %v861
    %v990 = vadd.f32 %v989, %v862
    %v991 = vadd.f32 %v990, %v863
    %v992 = vadd.f32 %v991, %v864
    %v993 = vadd.f32 %v992, %v865
    %v994 = vadd.f32 %v993, %v866
    %v995 = vadd.f32 %v994, %v867
    %v996 = vadd.f32 %v995, %v868
    %v997 = vadd.f32 %v996, %v869
    %v998 = vadd.f32 %v997, %v870
    %v999 = vadd.f32 %v998, %v871
    %v1000 = vadd.f32 %v999, %v872
    %v1001 = vrot.slane %v1000, 4
    %v1002 = vadd.f32 %v1000, %v1001
    %v1003 = vrot.slane %v1002, 2
    %v1004 = vadd.f32 %v1002, %v1003
    %v1005 = vrot.slane %v1004, 1
    %v1006 = vadd.f32 %v1004, %v1005
    %v1007 = vadd.f32 %v873, %v874
    %v1008 = vadd.f32 %v1007, %v875
    %v1009 = vadd.f32 %v1008, %v876
    %v1010 = vadd.f32 %v1009, %v877
    %v1011 = vadd.f32 %v1010, %v878
    %v1012 = vadd.f32 %v1011, %v879
    %v1013 = vadd.f32 %v1012, %v880
    %v1014 = vadd.f32 %v1013, %v881
    %v1015 = vadd.f32 %v1014, %v882
    %v1016 = vadd.f32 %v1015, %v883
    %v1017 = vadd.f32 %v1016, %v884
    %v1018 = vadd.f32 %v1017, %v885
    %v1019 = vadd.f32 %v1018, %v886
    %v1020 = vadd.f32 %v1019, %v887
    %v1021 = vadd.f32 %v1020, %v888
    %v1022 = vrot.slane %v1021, 4
    %v1023 = vadd.f32 %v1021, %v1022
    %v1024 = vrot.slane %v1023, 2
    %v1025 = vadd.f32 %v1023, %v1024
    %v1026 = vrot.slane %v1025, 1
    %v1027 = vadd.f32 %v1025, %v1026
    %v1028 = vadd.f32 %v889, %v890
    %v1029 = vadd.f32 %v1028, %v891
    %v1030 = vadd.f32 %v1029, %v892
    %v1031 = vadd.f32 %v1030, %v893
    %v1032 = vadd.f32 %v1031, %v894
    %v1033 = vadd.f32 %v1032, %v895
    %v1034 = vadd.f32 %v1033, %v896
    %v1035 = vadd.f32 %v1034, %v897
    %v1036 = vadd.f32 %v1035, %v898
    %v1037 = vadd.f32 %v1036, %v899
    %v1038 = vadd.f32 %v1037, %v900
    %v1039 = vadd.f32 %v1038, %v901
    %v1040 = vadd.f32 %v1039, %v902
    %v1041 = vadd.f32 %v1040, %v903
    %v1042 = vadd.f32 %v1041, %v904
    %v1043 = vrot.slane %v1042, 4
    %v1044 = vadd.f32 %v1042, %v1043
    %v1045 = vrot.slane %v1044, 2
    %v1046 = vadd.f32 %v1044, %v1045
    %v1047 = vrot.slane %v1046, 1
    %v1048 = vadd.f32 %v1046, %v1047
    %v1049 = vadd.f32 %v905, %v906
    %v1050 = vadd.f32 %v1049, %v907
    %v1051 = vadd.f32 %v1050, %v908
    %v1052 = vadd.f32 %v1051, %v909
    %v1053 = vadd.f32 %v1052, %v910
    %v1054 = vadd.f32 %v1053, %v911
    %v1055 = vadd.f32 %v1054, %v912
    %v1056 = vadd.f32 %v1055, %v913
    %v1057 = vadd.f32 %v1056, %v914
    %v1058 = vadd.f32 %v1057, %v915
    %v1059 = vadd.f32 %v1058, %v916
    %v1060 = vadd.f32 %v1059, %v917
    %v1061 = vadd.f32 %v1060, %v918
    %v1062 = vadd.f32 %v1061, %v919
    %v1063 = vadd.f32 %v1062, %v920
    %v1064 = vrot.slane %v1063, 4
    %v1065 = vadd.f32 %v1063, %v1064
    %v1066 = vrot.slane %v1065, 2
    %v1067 = vadd.f32 %v1065, %v1066
    %v1068 = vrot.slane %v1067, 1
    %v1069 = vadd.f32 %v1067, %v1068
    %v1070 = vadd.f32 %v921, %v922
    %v1071 = vadd.f32 %v1070, %v923
    %v1072 = vadd.f32 %v1071, %v924
    %v1073 = vadd.f32 %v1072, %v925
    %v1074 = vadd.f32 %v1073, %v926
    %v1075 = vadd.f32 %v1074, %v927
    %v1076 = vadd.f32 %v1075, %v928
    %v1077 = vadd.f32 %v1076, %v929
    %v1078 = vadd.f32 %v1077, %v930
    %v1079 = vadd.f32 %v1078, %v931
    %v1080 = vadd.f32 %v1079, %v932
    %v1081 = vadd.f32 %v1080, %v933
    %v1082 = vadd.f32 %v1081, %v934
    %v1083 = vadd.f32 %v1082, %v935
    %v1084 = vadd.f32 %v1083, %v936
    %v1085 = vrot.slane %v1084, 4
    %v1086 = vadd.f32 %v1084, %v1085
    %v1087 = vrot.slane %v1086, 2
    %v1088 = vadd.f32 %v1086, %v1087
    %v1089 = vrot.slane %v1088, 1
    %v1090 = vadd.f32 %v1088, %v1089
    %v1091 = vadd.f32 %v937, %v938
    %v1092 = vadd.f32 %v1091, %v939
    %v1093 = vadd.f32 %v1092, %v940
    %v1094 = vadd.f32 %v1093, %v941
    %v1095 = vadd.f32 %v1094, %v942
    %v1096 = vadd.f32 %v1095, %v943
    %v1097 = vadd.f32 %v1096, %v944
    %v1098 = vadd.f32 %v1097, %v945
    %v1099 = vadd.f32 %v1098, %v946
    %v1100 = vadd.f32 %v1099, %v947
    %v1101 = vadd.f32 %v1100, %v948
    %v1102 = vadd.f32 %v1101, %v949
    %v1103 = vadd.f32 %v1102, %v950
    %v1104 = vadd.f32 %v1103, %v951
    %v1105 = vadd.f32 %v1104, %v952
    %v1106 = vrot.slane %v1105, 4
    %v1107 = vadd.f32 %v1105, %v1106
    %v1108 = vrot.slane %v1107, 2
    %v1109 = vadd.f32 %v1107, %v1108
    %v1110 = vrot.slane %v1109, 1
    %v1111 = vadd.f32 %v1109, %v1110
    %v1112 = vadd.f32 %v953, %v954
    %v1113 = vadd.f32 %v1112, %v955
    %v1114 = vadd.f32 %v1113, %v956
    %v1115 = vadd.f32 %v1114, %v957
    %v1116 = vadd.f32 %v1115, %v958
    %v1117 = vadd.f32 %v1116, %v959
    %v1118 = vadd.f32 %v1117, %v960
    %v1119 = vadd.f32 %v1118, %v961
    %v1120 = vadd.f32 %v1119, %v962
    %v1121 = vadd.f32 %v1120, %v963
    %v1122 = vadd.f32 %v1121, %v964
    %v1123 = vadd.f32 %v1122, %v965
    %v1124 = vadd.f32 %v1123, %v966
    %v1125 = vadd.f32 %v1124, %v967
    %v1126 = vadd.f32 %v1125, %v968
    %v1127 = vrot.slane %v1126, 4
    %v1128 = vadd.f32 %v1126, %v1127
    %v1129 = vrot.slane %v1128, 2
    %v1130 = vadd.f32 %v1128, %v1129
    %v1131 = vrot.slane %v1130, 1
    %v1132 = vadd.f32 %v1130, %v1131
    %v1133 = vadd.f32 %v969, %v970
    %v1134 = vadd.f32 %v1133, %v971
    %v1135 = vadd.f32 %v1134, %v972
    %v1136 = vadd.f32 %v1135, %v973
    %v1137 = vadd.f32 %v1136, %v974
    %v1138 = vadd.f32 %v1137, %v975
    %v1139 = vadd.f32 %v1138, %v976
    %v1140 = vadd.f32 %v1139, %v977
    %v1141 = vadd.f32 %v1140, %v978
    %v1142 = vadd.f32 %v1141, %v979
    %v1143 = vadd.f32 %v1142, %v980
    %v1144 = vadd.f32 %v1143, %v981
    %v1145 = vadd.f32 %v1144, %v982
    %v1146 = vadd.f32 %v1145, %v983
    %v1147 = vadd.f32 %v1146, %v984
    %v1148 = vrot.slane %v1147, 4
    %v1149 = vadd.f32 %v1147, %v1148
    %v1150 = vrot.slane %v1149, 2
    %v1151 = vadd.f32 %v1149, %v1150
    %v1152 = vrot.slane %v1151, 1
    %v1153 = vadd.f32 %v1151, %v1152
    %vm1162 = vcmask 1041409
    %v1163 = vsel %vm1162, %v1027, %v1006
    %vm1164 = vcmask 1042434
    %v1165 = vsel %vm1164, %v1048, %v1163
    %vm1166 = vcmask 1043459
    %v1167 = vsel %vm1166, %v1069, %v1165
    %vm1168 = vcmask 1044484
    %v1169 = vsel %vm1168, %v1090, %v1167
    %vm1170 = vcmask 1045509
    %v1171 = vsel %vm1170, %v1111, %v1169
    %vm1172 = vcmask 1046534
    %v1173 = vsel %vm1172, %v1132, %v1171
    %vm1174 = vcmask 1047559
    %v1175 = vsel %vm1174, %v1153, %v1173
    %v1177 = vadd.f32 %v985, %v1175
    %1178 = vst [vmem:[#allocation2] sm:$0xff] %v1177
    // Predicated region
    $region34: #{tpu_custom_call.1} parent=1 // pred_check
      %p1179 = pneg %p57
    $region35: #{tpu_custom_call.1} parent=1 // pred_check_branch
      %1181 = sbr.rel (%p1179) target = $region37
    $region36: #{tpu_custom_call.1} parent=1 // pred_region
      %v1182 = vld [vmem:[#allocation2] sm:$0xff]
      %v1183 = vmul.f32 %v1182, 0.125
      %v1184 = vld [vmem:[#allocation6] sm:$0xff]
      %v1185 = vld [vmem:[#allocation6 + $0x8] sm:$0xff]
      %v1186 = vld [vmem:[#allocation6 + $0x10] sm:$0xff]
      %v1187 = vld [vmem:[#allocation6 + $0x18] sm:$0xff]
      %v1188 = vld [vmem:[#allocation6 + $0x20] sm:$0xff]
      %v1189 = vld [vmem:[#allocation6 + $0x28] sm:$0xff]
      %v1190 = vld [vmem:[#allocation6 + $0x30] sm:$0xff]
      %v1191 = vld [vmem:[#allocation6 + $0x38] sm:$0xff]
      %v1192 = vld [vmem:[#allocation6 + $0x40] sm:$0xff]
      %v1193 = vld [vmem:[#allocation6 + $0x48] sm:$0xff]
      %v1194 = vld [vmem:[#allocation6 + $0x50] sm:$0xff]
      %v1195 = vld [vmem:[#allocation6 + $0x58] sm:$0xff]
      %v1196 = vld [vmem:[#allocation6 + $0x60] sm:$0xff]
      %v1197 = vld [vmem:[#allocation6 + $0x68] sm:$0xff]
      %v1198 = vld [vmem:[#allocation6 + $0x70] sm:$0xff]
      %v1199 = vld [vmem:[#allocation6 + $0x78] sm:$0xff]
      %1200 = vmatprep.subr.mxu0 0.0
      %1201 = vmatpush1.msra.mxu0 %v1184
      %1202 = vmatprep.subr.mxu0 0.0
      %1203 = vmatpush1.msra.mxu0 %v1185
      %1204 = vmatprep.subr.mxu0 0.0
      %1205 = vmatpush1.msra.mxu0 %v1186
      %1206 = vmatprep.subr.mxu0 0.0
      %1207 = vmatpush1.msra.mxu0 %v1187
      %1208 = vmatprep.subr.mxu0 0.0
      %1209 = vmatpush1.msra.mxu0 %v1188
      %1210 = vmatprep.subr.mxu0 0.0
      %1211 = vmatpush1.msra.mxu0 %v1189
      %1212 = vmatprep.subr.mxu0 0.0
      %1213 = vmatpush1.msra.mxu0 %v1190
      %1214 = vmatprep.subr.mxu0 0.0
      %1215 = vmatpush1.msra.mxu0 %v1191
      %1216 = vmatprep.subr.mxu0 0.0
      %1217 = vmatpush1.msra.mxu0 %v1192
      %1218 = vmatprep.subr.mxu0 0.0
      %1219 = vmatpush1.msra.mxu0 %v1193
      %1220 = vmatprep.subr.mxu0 0.0
      %1221 = vmatpush1.msra.mxu0 %v1194
      %1222 = vmatprep.subr.mxu0 0.0
      %1223 = vmatpush1.msra.mxu0 %v1195
      %1224 = vmatprep.subr.mxu0 0.0
      %1225 = vmatpush1.msra.mxu0 %v1196
      %1226 = vmatprep.subr.mxu0 0.0
      %1227 = vmatpush1.msra.mxu0 %v1197
      %1228 = vmatprep.subr.mxu0 0.0
      %1229 = vmatpush1.msra.mxu0 %v1198
      %1230 = vmatprep.subr.mxu0 0.0
      %1231 = vmatpush1.msra.mxu0 %v1199
      %1232 = vmatprep.subr.mxu0 0.0
      %1233 = vmatpush1.msra.mxu0 0.0
      %1234 = vmatprep.subr.mxu0 0.0
      %1235 = vmatpush1.msra.mxu0 0.0
      %1236 = vmatprep.subr.mxu0 0.0
      %1237 = vmatpush1.msra.mxu0 0.0
      %1238 = vmatprep.subr.mxu0 0.0
      %1239 = vmatpush1.msra.mxu0 0.0
      %1240 = vmatprep.subr.mxu0 0.0
      %1241 = vmatpush1.msra.mxu0 0.0
      %1242 = vmatprep.subr.mxu0 0.0
      %1243 = vmatpush1.msra.mxu0 0.0
      %1244 = vmatprep.subr.mxu0 0.0
      %1245 = vmatpush1.msra.mxu0 0.0
      %1246 = vmatprep.subr.mxu0 0.0
      %1247 = vmatpush1.msra.mxu0 0.0
      %1248 = vmatprep.subr.mxu0 0.0
      %1249 = vmatpush1.msra.mxu0 0.0
      %1250 = vmatprep.subr.mxu0 0.0
      %1251 = vmatpush1.msra.mxu0 0.0
      %1252 = vmatprep.subr.mxu0 0.0
      %1253 = vmatpush1.msra.mxu0 0.0
      %1254 = vmatprep.subr.mxu0 0.0
      %1255 = vmatpush1.msra.mxu0 0.0
      %1256 = vmatprep.subr.mxu0 0.0
      %1257 = vmatpush1.msra.mxu0 0.0
      %1258 = vmatprep.subr.mxu0 0.0
      %1259 = vmatpush1.msra.mxu0 0.0
      %1260 = vmatprep.subr.mxu0 0.0
      %1261 = vmatpush1.msra.mxu0 0.0
      %1262 = vmatprep.subr.mxu0 0.0
      %1263 = vmatpush1.msra.mxu0 0.0
      %1264 = vmatprep.mubr.f32.mxu0 0.0
      %1265 = vmatmul.mubr.f32.gmra.mrb[0].mxu0 %v1183
      %v1266 = vpop.f32.mrb[0].mxu0
      %v1267 = vadd.f32 0.0, %v1266
      %v1268 = vpop.f32.mrb[0].mxu0
      %1269 = vdwg.mxu0
      %v1270 = vld [vmem:[#allocation8] sm:$0xff]
      %v1271 = vld [vmem:[#allocation8 + $0x8] sm:$0xff]
      %v1272 = vld [vmem:[#allocation8 + $0x10] sm:$0xff]
      %v1273 = vld [vmem:[#allocation8 + $0x18] sm:$0xff]
      %v1274 = vld [vmem:[#allocation8 + $0x20] sm:$0xff]
      %v1275 = vld [vmem:[#allocation8 + $0x28] sm:$0xff]
      %v1276 = vld [vmem:[#allocation8 + $0x30] sm:$0xff]
      %v1277 = vld [vmem:[#allocation8 + $0x38] sm:$0xff]
      %v1278 = vld [vmem:[#allocation8 + $0x40] sm:$0xff]
      %v1279 = vld [vmem:[#allocation8 + $0x48] sm:$0xff]
      %v1280 = vld [vmem:[#allocation8 + $0x50] sm:$0xff]
      %v1281 = vld [vmem:[#allocation8 + $0x58] sm:$0xff]
      %v1282 = vld [vmem:[#allocation8 + $0x60] sm:$0xff]
      %v1283 = vld [vmem:[#allocation8 + $0x68] sm:$0xff]
      %v1284 = vld [vmem:[#allocation8 + $0x70] sm:$0xff]
      %v1285 = vld [vmem:[#allocation8 + $0x78] sm:$0xff]
      %v1286 = vld [vmem:[%s3] sm:$0x1]
      %v1288 = vlaneseq
      %v1289 = vshrl.u32 %v1288, 7
      %v1290 = vsub.s32 0, %v1289
      %v1291 = vrot.slane %v1286, %v1290
      %1293 = vmatprep.subr.mxu0 0.0
      %1294 = vmatpush1.msra.mxu0 %v1270
      %1295 = vmatprep.subr.mxu0 0.0
      %1296 = vmatpush1.msra.mxu0 %v1271
      %1297 = vmatprep.subr.mxu0 0.0
      %1298 = vmatpush1.msra.mxu0 %v1272
      %1299 = vmatprep.subr.mxu0 0.0
      %1300 = vmatpush1.msra.mxu0 %v1273
      %1301 = vmatprep.subr.mxu0 0.0
      %1302 = vmatpush1.msra.mxu0 %v1274
      %1303 = vmatprep.subr.mxu0 0.0
      %1304 = vmatpush1.msra.mxu0 %v1275
      %1305 = vmatprep.subr.mxu0 0.0
      %1306 = vmatpush1.msra.mxu0 %v1276
      %1307 = vmatprep.subr.mxu0 0.0
      %1308 = vmatpush1.msra.mxu0 %v1277
      %1309 = vmatprep.subr.mxu0 0.0
      %1310 = vmatpush1.msra.mxu0 %v1278
      %1311 = vmatprep.subr.mxu0 0.0
      %1312 = vmatpush1.msra.mxu0 %v1279
      %1313 = vmatprep.subr.mxu0 0.0
      %1314 = vmatpush1.msra.mxu0 %v1280
      %1315 = vmatprep.subr.mxu0 0.0
      %1316 = vmatpush1.msra.mxu0 %v1281
      %1317 = vmatprep.subr.mxu0 0.0
      %1318 = vmatpush1.msra.mxu0 %v1282
      %1319 = vmatprep.subr.mxu0 0.0
      %1320 = vmatpush1.msra.mxu0 %v1283
      %1321 = vmatprep.subr.mxu0 0.0
      %1322 = vmatpush1.msra.mxu0 %v1284
      %1323 = vmatprep.subr.mxu0 0.0
      %1324 = vmatpush1.msra.mxu0 %v1285
      %1325 = vmatprep.subr.mxu0 0.0
      %1326 = vmatpush1.msra.mxu0 0.0
      %1327 = vmatprep.subr.mxu0 0.0
      %1328 = vmatpush1.msra.mxu0 0.0
      %1329 = vmatprep.subr.mxu0 0.0
      %1330 = vmatpush1.msra.mxu0 0.0
      %1331 = vmatprep.subr.mxu0 0.0
      %1332 = vmatpush1.msra.mxu0 0.0
      %1333 = vmatprep.subr.mxu0 0.0
      %1334 = vmatpush1.msra.mxu0 0.0
      %1335 = vmatprep.subr.mxu0 0.0
      %1336 = vmatpush1.msra.mxu0 0.0
      %1337 = vmatprep.subr.mxu0 0.0
      %1338 = vmatpush1.msra.mxu0 0.0
      %1339 = vmatprep.subr.mxu0 0.0
      %1340 = vmatpush1.msra.mxu0 0.0
      %1341 = vmatprep.subr.mxu0 0.0
      %1342 = vmatpush1.msra.mxu0 0.0
      %1343 = vmatprep.subr.mxu0 0.0
      %1344 = vmatpush1.msra.mxu0 0.0
      %1345 = vmatprep.subr.mxu0 0.0
      %1346 = vmatpush1.msra.mxu0 0.0
      %1347 = vmatprep.subr.mxu0 0.0
      %1348 = vmatpush1.msra.mxu0 0.0
      %1349 = vmatprep.subr.mxu0 0.0
      %1350 = vmatpush1.msra.mxu0 0.0
      %1351 = vmatprep.subr.mxu0 0.0
      %1352 = vmatpush1.msra.mxu0 0.0
      %1353 = vmatprep.subr.mxu0 0.0
      %1354 = vmatpush1.msra.mxu0 0.0
      %1355 = vmatprep.subr.mxu0 0.0
      %1356 = vmatpush1.msra.mxu0 0.0
      %1357 = vmatprep.mubr.f32.mxu0 0.0
      %1358 = vmatmul.mubr.f32.gmra.mrb[0].mxu0 %v1267
      %v1359 = vpop.f32.mrb[0].mxu0
      %v1360 = vadd.f32 %v1291, %v1359
      %v1361 = vpop.f32.mrb[0].mxu0
      %1362 = vdwg.mxu0
      %vm1363 = vcmp.lt.s32.totalorder %v64, 4
      %v1364 = vsel %vm1363, %v1360, -inf
      %1365 = vmax.xlane.f32.xlu0 %v1364
      %v1366 = vpop.xlane.xlu0 %1365
      %v1367 = vsub.f32 %v1364, %v1366
      %v1368 = vmul.f32 %v1367, 1.442695
      %v1369 = vpow.pop %v1368
      %1370 = vadd.xlane.f32.xlu0 %v1369
      %v1371 = vpop.xlane.xlu0 %1370
      %v1372 = vlog2.pop %v1371
      %v1373 = vmul.f32 %v1372, 0.6931472
      %v1374 = vsub.f32 %v1367, %v1373
      %1375 = vst [vmem:[#allocation9] sm:$0xff] %v1374
    $region37: #{tpu_custom_call.1} parent=1 // pred_fallthru
      _
    // Predicated region
    $region38: #{tpu_custom_call.1} parent=1 // pred_check
      _
    $region39: #{tpu_custom_call.1} parent=1 // pred_check_branch
      %1377 = sbr.rel (0) target = $region41
    $region40: #{tpu_custom_call.1} parent=1 // pred_region
      %s1379 = ssub.s32 128, 128
      %1380 = vsyncadd [#allocation5], %s1379
      %s1382 = sshll.u32 [#allocation9], 4
      %s1383 = int_to_ptr.vmem [resolvable:$true] %s1382
      %1385 = dma.vmem_to_hbm [thread:$0]  %s1383, 128, %s4, [#allocation5]
    $region41: #{tpu_custom_call.1} parent=1 // pred_fallthru
      _
    // Predicated region
    $region42: #{tpu_custom_call.1} parent=1 // pred_check
      _
    $region43: #{tpu_custom_call.1} parent=1 // pred_check_branch
      %1387 = sbr.rel (0) target = $region45
    $region44: #{tpu_custom_call.1} parent=1 // pred_region
      %1388 = dma.done [#allocation5], 128
    $region45: #{tpu_custom_call.1} parent=1 // pred_fallthru
      _
    %1389 = vsyncpa [#allocation4], 1
    %1390 = vsyncpa [#allocation7], 1
    %1391 = vsyncpa [#allocation5], 1

</llo_original>
